<compile_context>
chip_gen: v6e
topology: v6e:2x2x1
jax: 0.10.0
libtpu: 0.0.40
codegen_flags: <defaults>
</compile_context>

<pallas_src>
import functools
import math

import jax
import jax.numpy as jnp
from jax.experimental import pallas as pl
from jax.experimental.pallas import tpu as pltpu


# ---------------------------------------------------------------------------
# Activations (mirrors `fun.<act>(...)` / torch.sigmoid in the PyTorch forward)
# ---------------------------------------------------------------------------
_ACTS = {
    "relu": jax.nn.relu,
    "sigmoid": jax.nn.sigmoid,
    "tanh": jnp.tanh,
    "gelu": jax.nn.gelu,
    "elu": jax.nn.elu,
    "leaky_relu": jax.nn.leaky_relu,
    "softplus": jax.nn.softplus,
    "silu": jax.nn.silu,
}


def _apply_activation(h, act):
    if act is None:
        return h
    a = act.lower()
    if a in _ACTS:
        return _ACTS[a](h)
    return getattr(jax.nn, a)(h)  # fall back to any other jax.nn activation


def expand_activations(model, activation):
    """Same broadcasting rule as TonysMLP.__init__."""
    n = len(model) - 1
    if len(activation) == 1:
        return [activation[0]] * n
    if len(activation) != n:
        raise ValueError(
            "Length of the model and the list of activation functions are not matched!"
        )
    return list(activation)


def _round_up(n, m):
    return ((n + m - 1) // m) * m


def _vmem_capacity_bytes(default=64 << 20):
    """Per-core VMEM capacity; conservative 64 MiB (v7x) if the query fails."""
    try:
        info = pltpu.get_tpu_info()
        cap = getattr(info, "vmem_capacity_bytes", None)
        if cap:
            return int(cap)
    except Exception:
        pass
    return default


# ---------------------------------------------------------------------------
# Kernel
# ---------------------------------------------------------------------------
def make_mlp_kernel(activations, n_layers, mxu_dtype):
    """Kernel args: (x_ref, w1_ref, b1_ref, ..., wN_ref, bN_ref, o_ref)."""

    def kernel(x_ref, *refs):
        o_ref = refs[-1]
        h = x_ref[...]                                  # already mxu_dtype (bf16)
        for i in range(n_layers):
            w = refs[2 * i][...]                        # (k_i, n_i), mxu_dtype
            b = refs[2 * i + 1][...]                    # (1,  n_i), f32
            # bf16 x bf16 -> f32 accumulate on the MXU; bias/activation in f32.
            h = jnp.dot(h, w, preferred_element_type=jnp.float32)
            h = h + b
            h = _apply_activation(h, activations[i])
            if i < n_layers - 1:
                h = h.astype(mxu_dtype)                 # operands back to bf16
        o_ref[...] = h.astype(o_ref.dtype)

    return kernel


# ---------------------------------------------------------------------------
# One-time parameter preparation (transpose / pad / cast) -- cached by caller
# ---------------------------------------------------------------------------
def prepare_mlp_params(weights, biases, *, mxu_dtype=jnp.bfloat16):
    """Transpose PyTorch-layout (out,in) weights, pad feature dims, cast to bf16.

    Padding policy:
      * input dim: natural width (the x HBM stream stays at its real byte count)
      * hidden dims: multiples of 128 lanes (unmasked vregs / MXU tiles)
        # For genuinely wide layers on v6e/v7x, 256 multiples are also fine;
        # zero-padding beyond 128 alignment adds no real MXU utilization here.
      * output dim: natural width when < 128 (cuts store amplification, e.g.
        16x for out_dim=8), otherwise a multiple of 128 (lane-dense stores).
    """
    n_layers = len(weights)
    dims = [int(weights[0].shape[1])] + [int(w.shape[0]) for w in weights]

    pdims = [dims[0]]
    for d in dims[1:-1]:
        pdims.append(_round_up(d, 128))
    pdims.append(dims[-1] if dims[-1] < 128 else _round_up(dims[-1], 128))

    w_pad, b_pad = [], []
    for i in range(n_layers):
        wt = jnp.transpose(jnp.asarray(weights[i]))            # (in_i, out_i)
        wt = jnp.pad(wt, ((0, pdims[i] - dims[i]), (0, pdims[i + 1] - dims[i + 1])))
        w_pad.append(jax.device_put(wt.astype(mxu_dtype)))     # bf16 weights in HBM
        bb = jnp.pad(jnp.asarray(biases[i]).reshape(1, -1),
                     ((0, 0), (0, pdims[i + 1] - dims[i + 1])))
        b_pad.append(jax.device_put(bb.astype(jnp.float32)))   # bias add stays f32

    return dict(dims=dims, pdims=pdims, weights=w_pad, biases=b_pad,
                mxu_dtype=mxu_dtype)


# ---------------------------------------------------------------------------
# Forward wrapper
# ---------------------------------------------------------------------------
def tonys_mlp_forward(
    x,
    params,              # output of prepare_mlp_params (prepared ONCE)
    activations,         # list of activation names (or None), one per layer
    *,
    block_b=None,
    target_tiles=8,      # aim for >= 8 grid steps (pipelining + megacore balance)
    out_dtype=None,
    single_buffer_params=None,
    vmem_limit_bytes=None,
):
    dims, pdims = params["dims"], params["pdims"]
    w_pad, b_pad = params["weights"], params["biases"]
    mxu_dtype = params["mxu_dtype"]
    n_layers = len(w_pad)

    B, in_dim = x.shape
    assert in_dim == dims[0], (in_dim, dims[0])
    out_dim, out_p = dims[-1], pdims[-1]
    out_dtype = x.dtype if out_dtype is None else out_dtype

    # ---- batch tiling: deep grid, minimal row padding ----------------------
    if block_b is None:
        block_b = min(512, max(8, _round_up(pl.cdiv(B, target_tiles), 8)))
    block_b = max(8, _round_up(int(block_b), 8))
    B_pad = _round_up(B, block_b)
    grid = (B_pad // block_b,)

    # ---- x: cast to MXU dtype in HBM (half the input bytes), natural width --
    x_cast = x.astype(mxu_dtype)
    if B_pad != B:
        x_cast = jnp.pad(x_cast, ((0, B_pad - B), (0, 0)))

    # ---- VMEM budget / parameter residency ---------------------------------
    vmem_cap = _vmem_capacity_bytes()
    param_bytes = sum(int(a.size) * a.dtype.itemsize for a in (w_pad + b_pad))
    if single_buffer_params is None:
        # Constant index_map -> params are fetched once regardless; single-buffer
        # them only when their double-buffered footprint would matter.
        single_buffer_params = (2 * param_bytes) > int(0.35 * vmem_cap)
    param_buffers = 1 if single_buffer_params else 2
    # TODO(synk): when param_bytes * param_buffers + tiles exceeds ~70% of the
    # per-core VMEM (v7x: 64 MiB), switch to a layer-/K-tiled scheme (reduction
    # grid axis or pltpu.emit_pipeline over feature tiles with a VMEM f32
    # accumulator) instead of keeping every layer's weights resident.

    x_itemsize = jnp.dtype(mxu_dtype).itemsize
    out_itemsize = jnp.dtype(out_dtype).itemsize
    io_bytes = (2 * block_b * in_dim * x_itemsize          # double-buffered x tile
                + 2 * block_b * out_p * out_itemsize)       # double-buffered out tile
    inter_bytes = 3 * block_b * max(pdims) * 4               # f32 intermediates headroom
    if vmem_limit_bytes is None:
        needed = param_bytes * param_buffers + io_bytes + inter_bytes + (4 << 20)
        cap = min(int(0.75 * vmem_cap), 100 << 20)           # ~48 MiB on v7x, ~96 MiB on v5e/v6e
        vmem_limit_bytes = int(min(cap, max(16 << 20, int(1.25 * needed))))

    # ---- cost estimate for the XLA scheduler --------------------------------
    flops = 2 * B_pad * sum(pdims[i] * pdims[i + 1] for i in range(n_layers))
    transcendentals = sum(
        B_pad * pdims[i + 1]
        for i in range(n_layers)
        if activations[i] is not None
        and activations[i].lower() not in ("relu", "leaky_relu")
    )
    bytes_accessed = (int(x_cast.size) * x_itemsize
                      + param_bytes
                      + B_pad * out_p * out_itemsize)
    cost = pl.CostEstimate(flops=flops, transcendentals=transcendentals,
                           bytes_accessed=bytes_accessed)

    # ---- BlockSpecs ----------------------------------------------------------
    def _param_spec(shape):
        if single_buffer_params:
            return pl.BlockSpec(shape, lambda i: (0, 0), pipeline_mode=pl.Buffered(1))
        return pl.BlockSpec(shape, lambda i: (0, 0))   # constant index -> DMA'd once

    in_specs = [pl.BlockSpec((block_b, in_dim), lambda i: (i, 0))]
    args = [x_cast]
    for w, b in zip(w_pad, b_pad):
        in_specs.append(_param_spec(w.shape))
        in_specs.append(_param_spec(b.shape))
        args.append(w)
        args.append(b)

    out_spec = pl.BlockSpec((block_b, out_p), lambda i: (i, 0))
    kernel = make_mlp_kernel(list(activations), n_layers, mxu_dtype)

    out_pad = pl.pallas_call(
        kernel,
        out_shape=jax.ShapeDtypeStruct((B_pad, out_p), out_dtype),
        grid_spec=pltpu.PrefetchScalarGridSpec(
            num_scalar_prefetch=0,
            grid=grid,
            in_specs=in_specs,
            out_specs=out_spec,
        ),
        compiler_params=pltpu.CompilerParams(
            dimension_semantics=("parallel",),
            vmem_limit_bytes=vmem_limit_bytes,
        ),
        cost_estimate=cost,
    )(*args)

    out = out_pad
    if B_pad != B:
        out = out[:B]
    if out_p != out_dim:
        out = out[:, :out_dim]
    return out


# ---------------------------------------------------------------------------
# Init + pure-JAX reference (mirrors the kernel's bf16-operand / f32-acc math)
# ---------------------------------------------------------------------------
def init_params(model, key):
    """nn.Linear-style init: weight (out, in), bias (out,), U(-1/sqrt(fan_in), +)."""
    weights, biases = [], []
    for i in range(len(model) - 1):
        fan_in, fan_out = model[i], model[i + 1]
        key, kw, kb = jax.random.split(key, 3)
        bound = 1.0 / math.sqrt(fan_in)
        w = jax.random.uniform(kw, (fan_out, fan_in), jnp.float32, -bound, bound)
        b = jax.random.uniform(kb, (fan_out,), jnp.float32, -bound, bound)
        weights.append(w)
        biases.append(b)
    return weights, biases


def reference_forward(x, weights, biases, activations, mxu_dtype=jnp.bfloat16):
    h = x.astype(mxu_dtype)
    n = len(weights)
    for i, (w, b, a) in enumerate(zip(weights, biases, activations)):
        h = jnp.dot(h, jnp.transpose(w).astype(mxu_dtype),
                    preferred_element_type=jnp.float32) + b.astype(jnp.float32)
        h = _apply_activation(h, a)
        if i < n - 1:
            h = h.astype(mxu_dtype)
    return h.astype(x.dtype)


if __name__ == "__main__":
    # TonysMLP(model=[16, 64, 32, 8], activation=['relu', 'relu', 'sigmoid'])
    model = [16, 64, 32, 8]
    activations = expand_activations(model, ["relu", "relu", "sigmoid"])

    key = jax.random.PRNGKey(0)
    key, kx = jax.random.split(key)
    # batch deliberately not a power of two: default tiling gives block_b=40,
    # an 8-step grid (pipelining + balanced v7x megacore) and only 20 pad rows.
    batch = 300
    x = jax.random.normal(kx, (batch, model[0]), jnp.float32)

    weights, biases = init_params(model, key)
    params = prepare_mlp_params(weights, biases)     # one-time transpose/pad/cast

    fwd = jax.jit(functools.partial(tonys_mlp_forward,
                                    params=params, activations=activations))
    out = jax.block_until_ready(fwd(x))

    ref = reference_forward(x, weights, biases, activations)
    assert out.shape == (batch, model[-1]), out.shape
    assert jnp.allclose(out, ref, atol=5e-3, rtol=5e-3), "mismatch vs reference"

    print("KERNEL_OK")
</pallas_src>

<mosaic_0001>
module attributes {stable_mosaic.version = 11 : i64} {
  func.func @kernel(%arg0: i32, %arg1: memref<40x16xbf16, #tpu.memory_space<vmem>>, %arg2: memref<16x128xbf16, #tpu.memory_space<vmem>>, %arg3: memref<1x128xf32, #tpu.memory_space<vmem>>, %arg4: memref<128x128xbf16, #tpu.memory_space<vmem>>, %arg5: memref<1x128xf32, #tpu.memory_space<vmem>>, %arg6: memref<128x8xbf16, #tpu.memory_space<vmem>>, %arg7: memref<1x8xf32, #tpu.memory_space<vmem>>, %arg8: memref<40x8xf32, #tpu.memory_space<vmem>>) attributes {dimension_semantics = [#tpu.dimension_semantics<parallel>], iteration_bounds = array<i64: 8>, scalar_prefetch = 0 : i64, scratch_operands = 0 : i64, tpu.core_type = #tpu.core_type<tc>, window_params = [{transform_indices = @transform_0, window_bounds = array<i64: 40, 16>}, {pipeline_mode = #tpu.pipeline_mode<synchronous>, transform_indices = @transform_1, window_bounds = array<i64: 16, 128>}, {pipeline_mode = #tpu.pipeline_mode<synchronous>, transform_indices = @transform_2, window_bounds = array<i64: 1, 128>}, {pipeline_mode = #tpu.pipeline_mode<synchronous>, transform_indices = @transform_3, window_bounds = array<i64: 128, 128>}, {pipeline_mode = #tpu.pipeline_mode<synchronous>, transform_indices = @transform_4, window_bounds = array<i64: 1, 128>}, {pipeline_mode = #tpu.pipeline_mode<synchronous>, transform_indices = @transform_5, window_bounds = array<i64: 128, 8>}, {pipeline_mode = #tpu.pipeline_mode<synchronous>, transform_indices = @transform_6, window_bounds = array<i64: 1, 8>}, {transform_indices = @transform_7, window_bounds = array<i64: 40, 8>}]} {
    %c0 = arith.constant 0 : index
    %c0_0 = arith.constant 0 : index
    %0 = vector.load %arg1[%c0, %c0_0] : memref<40x16xbf16, #tpu.memory_space<vmem>>, vector<40x16xbf16>
    %c0_1 = arith.constant 0 : index
    %c0_2 = arith.constant 0 : index
    %1 = vector.load %arg2[%c0_1, %c0_2] : memref<16x128xbf16, #tpu.memory_space<vmem>>, vector<16x128xbf16>
    %c0_3 = arith.constant 0 : index
    %c0_4 = arith.constant 0 : index
    %2 = vector.load %arg3[%c0_3, %c0_4] : memref<1x128xf32, #tpu.memory_space<vmem>>, vector<1x128xf32>
    %cst = arith.constant dense<0.000000e+00> : vector<40x128xf32>
    %3 = tpu.matmul %0, %1, %cst {dimension_numbers = #tpu.dot_dimension_numbers<[1], [0], [0], [1], [0, 0, 1, 1], [], []>} : vector<40x16xbf16>, vector<16x128xbf16>, vector<40x128xf32> -> vector<40x128xf32>
    %4 = vector.broadcast %2 : vector<1x128xf32> to vector<40x128xf32>
    %5 = arith.addf %3, %4 : vector<40x128xf32>
    %cst_5 = arith.constant 0.000000e+00 : f32
    %6 = vector.broadcast %cst_5 : f32 to vector<40x128xf32>
    %7 = arith.maximumf %5, %6 : vector<40x128xf32>
    %8 = arith.truncf %7 : vector<40x128xf32> to vector<40x128xbf16>
    %c0_6 = arith.constant 0 : index
    %c0_7 = arith.constant 0 : index
    %9 = vector.load %arg4[%c0_6, %c0_7] : memref<128x128xbf16, #tpu.memory_space<vmem>>, vector<128x128xbf16>
    %c0_8 = arith.constant 0 : index
    %c0_9 = arith.constant 0 : index
    %10 = vector.load %arg5[%c0_8, %c0_9] : memref<1x128xf32, #tpu.memory_space<vmem>>, vector<1x128xf32>
    %cst_10 = arith.constant dense<0.000000e+00> : vector<40x128xf32>
    %11 = tpu.matmul %8, %9, %cst_10 {dimension_numbers = #tpu.dot_dimension_numbers<[1], [0], [0], [1], [0, 0, 1, 1], [], []>} : vector<40x128xbf16>, vector<128x128xbf16>, vector<40x128xf32> -> vector<40x128xf32>
    %12 = vector.broadcast %10 : vector<1x128xf32> to vector<40x128xf32>
    %13 = arith.addf %11, %12 : vector<40x128xf32>
    %cst_11 = arith.constant 0.000000e+00 : f32
    %14 = vector.broadcast %cst_11 : f32 to vector<40x128xf32>
    %15 = arith.maximumf %13, %14 : vector<40x128xf32>
    %16 = arith.truncf %15 : vector<40x128xf32> to vector<40x128xbf16>
    %c0_12 = arith.constant 0 : index
    %c0_13 = arith.constant 0 : index
    %17 = vector.load %arg6[%c0_12, %c0_13] : memref<128x8xbf16, #tpu.memory_space<vmem>>, vector<128x8xbf16>
    %c0_14 = arith.constant 0 : index
    %c0_15 = arith.constant 0 : index
    %18 = vector.load %arg7[%c0_14, %c0_15] : memref<1x8xf32, #tpu.memory_space<vmem>>, vector<1x8xf32>
    %cst_16 = arith.constant dense<0.000000e+00> : vector<40x8xf32>
    %19 = tpu.matmul %16, %17, %cst_16 {dimension_numbers = #tpu.dot_dimension_numbers<[1], [0], [0], [1], [0, 0, 1, 1], [], []>} : vector<40x128xbf16>, vector<128x8xbf16>, vector<40x8xf32> -> vector<40x8xf32>
    %20 = vector.broadcast %18 : vector<1x8xf32> to vector<40x8xf32>
    %21 = arith.addf %19, %20 : vector<40x8xf32>
    %22 = arith.negf %21 : vector<40x8xf32>
    %23 = math.exp %22 : vector<40x8xf32>
    %cst_17 = arith.constant 1.000000e+00 : f32
    %24 = vector.broadcast %cst_17 : f32 to vector<40x8xf32>
    %25 = arith.addf %24, %23 : vector<40x8xf32>
    %26 = arith.divf %24, %25 : vector<40x8xf32>
    %c0_18 = arith.constant 0 : index
    %c0_19 = arith.constant 0 : index
    %27 = vector.load %arg8[%c0_18, %c0_19] : memref<40x8xf32, #tpu.memory_space<vmem>>, vector<40x8xf32>
    tpu.vector_store %arg8[%c0_18, %c0_19], %26 {strides = array<i32>} : memref<40x8xf32, #tpu.memory_space<vmem>>, vector<40x8xf32>,
    return
  }
  func.func @transform_0(%arg0: i32) -> (i32, i32) {
    %c0_i32 = arith.constant 0 : i32
    %c0_i32_0 = arith.constant 0 : i32
    return %arg0, %c0_i32 : i32, i32
  }
  func.func @transform_1(%arg0: i32) -> (i32, i32) {
    %c0_i32 = arith.constant 0 : i32
    %c0_i32_0 = arith.constant 0 : i32
    %c0_i32_1 = arith.constant 0 : i32
    return %c0_i32, %c0_i32_0 : i32, i32
  }
  func.func @transform_2(%arg0: i32) -> (i32, i32) {
    %c0_i32 = arith.constant 0 : i32
    %c0_i32_0 = arith.constant 0 : i32
    %c0_i32_1 = arith.constant 0 : i32
    return %c0_i32, %c0_i32_0 : i32, i32
  }
  func.func @transform_3(%arg0: i32) -> (i32, i32) {
    %c0_i32 = arith.constant 0 : i32
    %c0_i32_0 = arith.constant 0 : i32
    %c0_i32_1 = arith.constant 0 : i32
    return %c0_i32, %c0_i32_0 : i32, i32
  }
  func.func @transform_4(%arg0: i32) -> (i32, i32) {
    %c0_i32 = arith.constant 0 : i32
    %c0_i32_0 = arith.constant 0 : i32
    %c0_i32_1 = arith.constant 0 : i32
    return %c0_i32, %c0_i32_0 : i32, i32
  }
  func.func @transform_5(%arg0: i32) -> (i32, i32) {
    %c0_i32 = arith.constant 0 : i32
    %c0_i32_0 = arith.constant 0 : i32
    %c0_i32_1 = arith.constant 0 : i32
    return %c0_i32, %c0_i32_0 : i32, i32
  }
  func.func @transform_6(%arg0: i32) -> (i32, i32) {
    %c0_i32 = arith.constant 0 : i32
    %c0_i32_0 = arith.constant 0 : i32
    %c0_i32_1 = arith.constant 0 : i32
    return %c0_i32, %c0_i32_0 : i32, i32
  }
  func.func @transform_7(%arg0: i32) -> (i32, i32) {
    %c0_i32 = arith.constant 0 : i32
    %c0_i32_0 = arith.constant 0 : i32
    return %arg0, %c0_i32 : i32, i32
  }
}

</mosaic_0001>

<llo_original>
// kernel: tonys_mlp_forward.1
$region0: #{tonys_mlp_forward.1}
  #allocation0 [shape = 'u32[]', space=smem, size = 0x4, offset = 0x4, fixed_abs, tag = 'smem constant byte address 0x4 - core index']
  #allocation1 [shape = 'u32[144,128]{1,0:T(1,128)}', space=vmem, size = 0x12000, scoped, tag = 'internal scratch']
  %s0 = inlined_call_operand.vmem [shape: bf16[320,16], index: 0, kind: input, shape index: {}]
  %s1 = inlined_call_operand.vmem [shape: bf16[16,128], index: 1, kind: input, shape index: {}]
  %s2 = inlined_call_operand.vmem [shape: f32[1,128], index: 2, kind: input, shape index: {}]
  %s3 = inlined_call_operand.vmem [shape: bf16[128,128], index: 3, kind: input, shape index: {}]
  %s4 = inlined_call_operand.vmem [shape: f32[1,128], index: 4, kind: input, shape index: {}]
  %s5 = inlined_call_operand.vmem [shape: bf16[128,8], index: 5, kind: input, shape index: {}]
  %s6 = inlined_call_operand.vmem [shape: f32[1,8], index: 6, kind: input, shape index: {}]
  %s7 = inlined_call_operand.vmem [shape: f32[320,8], index: 7, kind: output, shape index: {}]
  %s8 = sld [smem:[#allocation0]]
  $region61: #{tonys_mlp_forward.1} parent=0
    _
  %s10 = ssub.s32 1, %s8
  %s11 = scalar_select 0, %s10, %s8
  loop: start=0, step=1, limit=10
  $region2: #{tonys_mlp_forward.1} parent=0 // loop_pre_header
    _
  $region3: #{tonys_mlp_forward.1} parent=0 // loop_header
    %s13 = sphi 0, %s17
    %p14 = scmp.ge.s32.totalorder %s13, 10
    %s23 = sphi 0, %s25
    %s26 = sphi 0, %s23
    %s27 = sphi 0, %s26
    %s43 = sphi 0, %s27
    %s47 = sphi 0, %s47
    %s49 = sphi 0, %s47
    %s50 = sphi 0, %s49
    %s64 = sphi 0, %s50
    %s68 = sphi 0, %s68
    %s70 = sphi 0, %s68
    %s71 = sphi 0, %s70
    %s85 = sphi 0, %s71
    %s89 = sphi 0, %s89
    %s91 = sphi 0, %s89
    %s92 = sphi 0, %s91
    %s106 = sphi 0, %s92
    %s110 = sphi 0, %s110
    %s112 = sphi 0, %s110
    %s113 = sphi 0, %s112
    %s127 = sphi 0, %s113
    %s131 = sphi 0, %s131
    %s133 = sphi 0, %s131
    %s134 = sphi 0, %s133
    %s148 = sphi 0, %s134
    %s152 = sphi 0, %s152
    %s154 = sphi 0, %s152
    %s155 = sphi 0, %s154
    %s169 = sphi 0, %s155
    %s175 = sphi 0, %s177
    %s178 = sphi 0, %s175
    %s179 = sphi 0, %s178
    %s195 = sphi 0, %s179
  $region4: #{tonys_mlp_forward.1} parent=0 // loop_header_branch
    %16 = sbr.rel (%p14) target = $region8
  $region5: #{tonys_mlp_forward.1} parent=0 // loop_body
    %s18 = ssub.s32 %s13, 1
    %s19 = ssub.s32 %s13, 2
    %s20 = sadd.s32 %s13, 1
    %s21 = ssub.s32 %s13, %s20
    %p22 = scmp.eq.s32.totalorder %s21, 0
    %s24 = sadd.s32 %s23, 1
    %s25 = scalar_select %p22, %s23, %s24
    %p28 = pneg %p22
    %p29 = scmp.eq.s32.totalorder %s13, 7
    %p30 = por %p28, %p29
    %p31 = scmp.ne.s32.totalorder %s23, %s26
    %p32 = scmp.eq.s32.totalorder %s13, 0
    %p33 = por %p31, %p32
    %p34 = scmp.ne.s32.totalorder %s23, %s26
    %p35 = scmp.eq.s32.totalorder %s18, 7
    %p36 = por %p34, %p35
    %p37 = scmp.ne.s32.totalorder %s26, %s27
    %p38 = scmp.eq.s32.totalorder %s18, 0
    %p39 = por %p37, %p38
    %p40 = scmp.ne.s32.totalorder %s26, %s27
    %p41 = scmp.eq.s32.totalorder %s19, 7
    %p42 = por %p40, %p41
    %p44 = scmp.ne.s32.totalorder %s27, %s43
    %p45 = scmp.eq.s32.totalorder %s19, 0
    %p46 = por %p44, %p45
    %s48 = sadd.s32 %s47, 1
    %p51 = scmp.eq.s32.totalorder %s13, 7
    %p52 = scmp.ne.s32.totalorder %s47, %s49
    %p53 = scmp.eq.s32.totalorder %s13, 0
    %p54 = por %p52, %p53
    %p55 = scmp.ne.s32.totalorder %s47, %s49
    %p56 = scmp.eq.s32.totalorder %s18, 7
    %p57 = por %p55, %p56
    %p58 = scmp.ne.s32.totalorder %s49, %s50
    %p59 = scmp.eq.s32.totalorder %s18, 0
    %p60 = por %p58, %p59
    %p61 = scmp.ne.s32.totalorder %s49, %s50
    %p62 = scmp.eq.s32.totalorder %s19, 7
    %p63 = por %p61, %p62
    %p65 = scmp.ne.s32.totalorder %s50, %s64
    %p66 = scmp.eq.s32.totalorder %s19, 0
    %p67 = por %p65, %p66
    %s69 = sadd.s32 %s68, 1
    %p72 = scmp.eq.s32.totalorder %s13, 7
    %p73 = scmp.ne.s32.totalorder %s68, %s70
    %p74 = scmp.eq.s32.totalorder %s13, 0
    %p75 = por %p73, %p74
    %p76 = scmp.ne.s32.totalorder %s68, %s70
    %p77 = scmp.eq.s32.totalorder %s18, 7
    %p78 = por %p76, %p77
    %p79 = scmp.ne.s32.totalorder %s70, %s71
    %p80 = scmp.eq.s32.totalorder %s18, 0
    %p81 = por %p79, %p80
    %p82 = scmp.ne.s32.totalorder %s70, %s71
    %p83 = scmp.eq.s32.totalorder %s19, 7
    %p84 = por %p82, %p83
    %p86 = scmp.ne.s32.totalorder %s71, %s85
    %p87 = scmp.eq.s32.totalorder %s19, 0
    %p88 = por %p86, %p87
    %s90 = sadd.s32 %s89, 1
    %p93 = scmp.eq.s32.totalorder %s13, 7
    %p94 = scmp.ne.s32.totalorder %s89, %s91
    %p95 = scmp.eq.s32.totalorder %s13, 0
    %p96 = por %p94, %p95
    %p97 = scmp.ne.s32.totalorder %s89, %s91
    %p98 = scmp.eq.s32.totalorder %s18, 7
    %p99 = por %p97, %p98
    %p100 = scmp.ne.s32.totalorder %s91, %s92
    %p101 = scmp.eq.s32.totalorder %s18, 0
    %p102 = por %p100, %p101
    %p103 = scmp.ne.s32.totalorder %s91, %s92
    %p104 = scmp.eq.s32.totalorder %s19, 7
    %p105 = por %p103, %p104
    %p107 = scmp.ne.s32.totalorder %s92, %s106
    %p108 = scmp.eq.s32.totalorder %s19, 0
    %p109 = por %p107, %p108
    %s111 = sadd.s32 %s110, 1
    %p114 = scmp.eq.s32.totalorder %s13, 7
    %p115 = scmp.ne.s32.totalorder %s110, %s112
    %p116 = scmp.eq.s32.totalorder %s13, 0
    %p117 = por %p115, %p116
    %p118 = scmp.ne.s32.totalorder %s110, %s112
    %p119 = scmp.eq.s32.totalorder %s18, 7
    %p120 = por %p118, %p119
    %p121 = scmp.ne.s32.totalorder %s112, %s113
    %p122 = scmp.eq.s32.totalorder %s18, 0
    %p123 = por %p121, %p122
    %p124 = scmp.ne.s32.totalorder %s112, %s113
    %p125 = scmp.eq.s32.totalorder %s19, 7
    %p126 = por %p124, %p125
    %p128 = scmp.ne.s32.totalorder %s113, %s127
    %p129 = scmp.eq.s32.totalorder %s19, 0
    %p130 = por %p128, %p129
    %s132 = sadd.s32 %s131, 1
    %p135 = scmp.eq.s32.totalorder %s13, 7
    %p136 = scmp.ne.s32.totalorder %s131, %s133
    %p137 = scmp.eq.s32.totalorder %s13, 0
    %p138 = por %p136, %p137
    %p139 = scmp.ne.s32.totalorder %s131, %s133
    %p140 = scmp.eq.s32.totalorder %s18, 7
    %p141 = por %p139, %p140
    %p142 = scmp.ne.s32.totalorder %s133, %s134
    %p143 = scmp.eq.s32.totalorder %s18, 0
    %p144 = por %p142, %p143
    %p145 = scmp.ne.s32.totalorder %s133, %s134
    %p146 = scmp.eq.s32.totalorder %s19, 7
    %p147 = por %p145, %p146
    %p149 = scmp.ne.s32.totalorder %s134, %s148
    %p150 = scmp.eq.s32.totalorder %s19, 0
    %p151 = por %p149, %p150
    %s153 = sadd.s32 %s152, 1
    %p156 = scmp.eq.s32.totalorder %s13, 7
    %p157 = scmp.ne.s32.totalorder %s152, %s154
    %p158 = scmp.eq.s32.totalorder %s13, 0
    %p159 = por %p157, %p158
    %p160 = scmp.ne.s32.totalorder %s152, %s154
    %p161 = scmp.eq.s32.totalorder %s18, 7
    %p162 = por %p160, %p161
    %p163 = scmp.ne.s32.totalorder %s154, %s155
    %p164 = scmp.eq.s32.totalorder %s18, 0
    %p165 = por %p163, %p164
    %p166 = scmp.ne.s32.totalorder %s154, %s155
    %p167 = scmp.eq.s32.totalorder %s19, 7
    %p168 = por %p166, %p167
    %p170 = scmp.ne.s32.totalorder %s155, %s169
    %p171 = scmp.eq.s32.totalorder %s19, 0
    %p172 = por %p170, %p171
    %s173 = ssub.s32 %s13, %s20
    %p174 = scmp.eq.s32.totalorder %s173, 0
    %s176 = sadd.s32 %s175, 1
    %s177 = scalar_select %p174, %s175, %s176
    %p180 = pneg %p174
    %p181 = scmp.eq.s32.totalorder %s13, 7
    %p182 = por %p180, %p181
    %p183 = scmp.ne.s32.totalorder %s175, %s178
    %p184 = scmp.eq.s32.totalorder %s13, 0
    %p185 = por %p183, %p184
    %p186 = scmp.ne.s32.totalorder %s175, %s178
    %p187 = scmp.eq.s32.totalorder %s18, 7
    %p188 = por %p186, %p187
    %p189 = scmp.ne.s32.totalorder %s178, %s179
    %p190 = scmp.eq.s32.totalorder %s18, 0
    %p191 = por %p189, %p190
    %p192 = scmp.ne.s32.totalorder %s178, %s179
    %p193 = scmp.eq.s32.totalorder %s19, 7
    %p194 = por %p192, %p193
    %p196 = scmp.ne.s32.totalorder %s179, %s195
    %p197 = scmp.eq.s32.totalorder %s19, 0
    %p198 = por %p196, %p197
    %p199 = scmp.le.s32.totalorder 1, %s13
    %p200 = scmp.lt.s32.totalorder %s13, 9
    %p201 = pnand %p199, %p200
    %p202 = pneg %p201
    // Predicated region
    $region9: #{tonys_mlp_forward.1} parent=5 // pred_check
      _
    $region10: #{tonys_mlp_forward.1} parent=5 // pred_check_branch
      %204 = sbr.rel (%p201) target = $region12
    $region11: #{tonys_mlp_forward.1} parent=5 // pred_region
      %s205 = ssub.s32 %s13, 1
      // Predicated region
      $region13: #{tonys_mlp_forward.1} parent=11 // pred_check
        %p206 = pneg %p60
      $region14: #{tonys_mlp_forward.1} parent=11 // pred_check_branch
        %208 = sbr.rel (%p206) target = $region16
      $region15: #{tonys_mlp_forward.1} parent=11 // pred_region
        _
      $region16: #{tonys_mlp_forward.1} parent=11 // pred_fallthru
        _
      // Predicated region
      $region17: #{tonys_mlp_forward.1} parent=11 // pred_check
        %p209 = pneg %p81
      $region18: #{tonys_mlp_forward.1} parent=11 // pred_check_branch
        %211 = sbr.rel (%p209) target = $region20
      $region19: #{tonys_mlp_forward.1} parent=11 // pred_region
        _
      $region20: #{tonys_mlp_forward.1} parent=11 // pred_fallthru
        _
      // Predicated region
      $region21: #{tonys_mlp_forward.1} parent=11 // pred_check
        %p212 = pneg %p102
      $region22: #{tonys_mlp_forward.1} parent=11 // pred_check_branch
        %214 = sbr.rel (%p212) target = $region24
      $region23: #{tonys_mlp_forward.1} parent=11 // pred_region
        _
      $region24: #{tonys_mlp_forward.1} parent=11 // pred_fallthru
        _
      // Predicated region
      $region25: #{tonys_mlp_forward.1} parent=11 // pred_check
        %p215 = pneg %p123
      $region26: #{tonys_mlp_forward.1} parent=11 // pred_check_branch
        %217 = sbr.rel (%p215) target = $region28
      $region27: #{tonys_mlp_forward.1} parent=11 // pred_region
        _
      $region28: #{tonys_mlp_forward.1} parent=11 // pred_fallthru
        _
      // Predicated region
      $region29: #{tonys_mlp_forward.1} parent=11 // pred_check
        %p218 = pneg %p144
      $region30: #{tonys_mlp_forward.1} parent=11 // pred_check_branch
        %220 = sbr.rel (%p218) target = $region32
      $region31: #{tonys_mlp_forward.1} parent=11 // pred_region
        _
      $region32: #{tonys_mlp_forward.1} parent=11 // pred_fallthru
        _
      // Predicated region
      $region33: #{tonys_mlp_forward.1} parent=11 // pred_check
        %p221 = pneg %p165
      $region34: #{tonys_mlp_forward.1} parent=11 // pred_check_branch
        %223 = sbr.rel (%p221) target = $region36
      $region35: #{tonys_mlp_forward.1} parent=11 // pred_region
        _
      $region36: #{tonys_mlp_forward.1} parent=11 // pred_fallthru
        _
    $region12: #{tonys_mlp_forward.1} parent=5 // pred_fallthru
      _
    %p224 = scmp.lt.s32.totalorder %s13, 8
    // Predicated region
    $region37: #{tonys_mlp_forward.1} parent=5 // pred_check
      %p225 = pneg %p224
    $region38: #{tonys_mlp_forward.1} parent=5 // pred_check_branch
      %227 = sbr.rel (%p225) target = $region40
    $region39: #{tonys_mlp_forward.1} parent=5 // pred_region
      // Predicated region
      $region41: #{tonys_mlp_forward.1} parent=39 // pred_check
        %p228 = pneg %p33
      $region42: #{tonys_mlp_forward.1} parent=39 // pred_check_branch
        %230 = sbr.rel (%p228) target = $region44
      $region43: #{tonys_mlp_forward.1} parent=39 // pred_region
        %s231 = smul.u32 5, %s13
        %p232 = scmp.lt.s32.totalorder %s231, 39
        %s233 = scalar_select %p232, %s231, 39
        %s234 = smul.addr %s233, 4
        %s235 = scalar_lea.vmem %s0, %s234
        %s236 = smul.u32 5, %s13
      $region44: #{tonys_mlp_forward.1} parent=39 // pred_fallthru
        _
    $region40: #{tonys_mlp_forward.1} parent=5 // pred_fallthru
      _
    %p237 = scmp.le.s32.totalorder 1, %s13
    %p238 = scmp.lt.s32.totalorder %s13, 9
    %p239 = pnand %p237, %p238
    %p240 = pneg %p239
    // Predicated region
    $region45: #{tonys_mlp_forward.1} parent=5 // pred_check
      _
    $region46: #{tonys_mlp_forward.1} parent=5 // pred_check_branch
      %242 = sbr.rel (%p239) target = $region48
    $region47: #{tonys_mlp_forward.1} parent=5 // pred_region
      %s243 = ssub.s32 %s13, 1
      %s244 = smul.u32 5, %s18
      %p245 = scmp.lt.s32.totalorder %s244, 39
      %s246 = scalar_select %p245, %s244, 39
      %s247 = smul.addr %s246, 4
      %s248 = scalar_lea.vmem %s0, %s247
      %p249 = pneg %p39
      %p250 = pneg %p36
      %p251 = pneg %p60
      %p252 = pneg %p57
      %p253 = pneg %p81
      %p254 = pneg %p78
      %p255 = pneg %p102
      %p256 = pneg %p99
      %p257 = pneg %p123
      %p258 = pneg %p120
      %p259 = pneg %p144
      %p260 = pneg %p141
      %p261 = pneg %p165
      %p262 = pneg %p162
      %p263 = pneg %p191
      %p264 = pneg %p188
      %s265 = smul.u32 5, %s18
      %p266 = scmp.lt.s32.totalorder %s265, 39
      %s267 = scalar_select %p266, %s265, 39
      %s268 = smul.addr %s267, 8
      %s269 = scalar_lea.vmem %s7, %s268
      %s270 = smul.u32 5, %s18
      %p271 = scmp.lt.s32.totalorder %s270, 39
      %s272 = scalar_select %p271, %s270, 39
      %s273 = smul.addr %s272, 4
      %s274 = scalar_lea.vmem %s0, %s273
      %s275 = smul.u32 5, %s18
      %s276 = smul.u32 5, %s18
      %p277 = scmp.lt.s32.totalorder %s276, 39
      %s278 = scalar_select %p277, %s276, 39
      %s279 = smul.addr %s278, 8
      %s280 = scalar_lea.vmem %s7, %s279
      %s281 = smul.u32 5, %s18
      %v283 = vld [vmem:[%s274] sm:$0xf]
      %v284 = vld [vmem:[%s274 + $0x4] sm:$0xf]
      %v285 = vld [vmem:[%s274 + $0x8] sm:$0xf]
      %v286 = vld [vmem:[%s274 + $0xc] sm:$0xf]
      %v287 = vld [vmem:[%s274 + $0x10] sm:$0xf]
      %v288 = vld [vmem:[%s1] sm:$0xf]
      %v289 = vld [vmem:[%s1 + $0x4] sm:$0xf]
      %v290 = vld [vmem:[%s2] sm:$0x1]
      %v292 = vlaneseq
      %v293 = vshrl.u32 %v292, 7
      %v294 = vsub.s32 0, %v293
      %v295 = vrot.slane %v290, %v294
      %v302 = vunpack.c.l.b16 %v283
      %v303 = vunpack.c.l.b16 %v284
      %v304 = vunpack.c.l.b16 %v285
      %v305 = vunpack.c.l.b16 %v286
      %v306 = vunpack.c.l.b16 %v287
      %v307 = vpack.c.b16 %v303, %v302
      %v308 = vpack.c.b16 %v305, %v304
      %v309 = vpack.c.b16 %v306, %v306
      %v312 = vunpack.c.l.b16 %v288
      %v313 = vunpack.c.l.b16 %v289
      %v314 = vpack.c.b16 %v313, %v312
      %vm316 = vcmask 130048
      %v318 = vsel %vm316, %v307, 0
      %v321 = vsel %vm316, %v308, 0
      %v324 = vsel %vm316, %v309, 0
      %326 = vmatprep.subr.bf16.mxu0 0
      %327 = vmatpush1.bf16.msra.mxu0 0
      %328 = vmatprep.subr.bf16.mxu0 0
      %329 = vmatpush1.bf16.msra.mxu0 0
      %330 = vmatprep.subr.bf16.mxu0 0
      %331 = vmatpush1.bf16.msra.mxu0 0
      %332 = vmatprep.subr.bf16.mxu0 0
      %333 = vmatpush1.bf16.msra.mxu0 0
      %334 = vmatprep.subr.bf16.mxu0 0
      %335 = vmatpush1.bf16.msra.mxu0 0
      %336 = vmatprep.subr.bf16.mxu0 0
      %337 = vmatpush1.bf16.msra.mxu0 0
      %338 = vmatprep.subr.bf16.mxu0 0
      %339 = vmatpush1.bf16.msra.mxu0 0
      %340 = vmatprep.subr.bf16.mxu0 0
      %341 = vmatpush1.bf16.msra.mxu0 %v314
      %342 = vmatprep.subr.bf16.mxu0 0
      %343 = vmatpush2.bf16.msra.mxu0 0
      %344 = vmatprep.subr.bf16.mxu0 0
      %345 = vmatpush2.bf16.msra.mxu0 0
      %346 = vmatprep.subr.bf16.mxu0 0
      %347 = vmatpush2.bf16.msra.mxu0 0
      %348 = vmatprep.subr.bf16.mxu0 0
      %349 = vmatpush2.bf16.msra.mxu0 0
      %350 = vmatprep.subr.bf16.mxu0 0
      %351 = vmatpush2.bf16.msra.mxu0 0
      %352 = vmatprep.subr.bf16.mxu0 0
      %353 = vmatpush2.bf16.msra.mxu0 0
      %354 = vmatprep.subr.bf16.mxu0 0
      %355 = vmatpush2.bf16.msra.mxu0 0
      %356 = vmatprep.subr.bf16.mxu0 0
      %357 = vmatpush2.bf16.msra.mxu0 0
      %358 = vmatprep.mubr.bf16.mxu0 0
      %359 = vmatmul.mubr.bf16.gmra.mxu0 %v318
      %v360 = vpop.f32.mrf.mxu0
      %v361 = vadd.f32 %v295, %v360
      %v362 = vpop.f32.mrf.mxu0
      %v363 = vpop.f32.mrf.mxu0
      %v364 = vadd.f32 %v295, %v363
      %v365 = vpop.f32.mrf.mxu0
      %366 = vmatprep.mubr.bf16.mxu0 0
      %367 = vmatmul.mubr.bf16.gmra.mxu0 %v321
      %v368 = vpop.f32.mrf.mxu0
      %v369 = vadd.f32 %v295, %v368
      %v370 = vpop.f32.mrf.mxu0
      %v371 = vpop.f32.mrf.mxu0
      %v372 = vadd.f32 %v295, %v371
      %v373 = vpop.f32.mrf.mxu0
      %374 = vmatprep.mubr.bf16.mxu0 0
      %375 = vmatmul.mubr.bf16.gmra.mxu0 %v324
      %v376 = vpop.f32.mrf.mxu0
      %v377 = vadd.f32 %v295, %v376
      %v378 = vpop.f32.mrf.mxu0
      %v379 = vpop.f32.mrf.mxu0
      %v380 = vpop.f32.mrf.mxu0
      %381 = vdwg.mxu0
      %v382 = vmax.f32 %v361, 0.0
      %v383 = vmax.f32 %v364, 0.0
      %v384 = vmax.f32 %v369, 0.0
      %v385 = vmax.f32 %v372, 0.0
      %v386 = vmax.f32 %v377, 0.0
      %v387 = vpack.c.bf16 %v383, %v382
      %v388 = vpack.c.bf16 %v385, %v384
      %v389 = vpack.c.bf16 %v386, %v386
      %v390 = vld [vmem:[%s3] sm:$0xf]
      %v391 = vld [vmem:[%s3 + $0x4] sm:$0xf]
      %v392 = vld [vmem:[%s3 + $0x8] sm:$0xf]
      %v393 = vld [vmem:[%s3 + $0xc] sm:$0xf]
      %v394 = vld [vmem:[%s3 + $0x10] sm:$0xf]
      %v395 = vld [vmem:[%s3 + $0x14] sm:$0xf]
      %v396 = vld [vmem:[%s3 + $0x18] sm:$0xf]
      %v397 = vld [vmem:[%s3 + $0x1c] sm:$0xf]
      %v398 = vld [vmem:[%s3 + $0x20] sm:$0xf]
      %v399 = vld [vmem:[%s3 + $0x24] sm:$0xf]
      %v400 = vld [vmem:[%s3 + $0x28] sm:$0xf]
      %v401 = vld [vmem:[%s3 + $0x2c] sm:$0xf]
      %v402 = vld [vmem:[%s3 + $0x30] sm:$0xf]
      %v403 = vld [vmem:[%s3 + $0x34] sm:$0xf]
      %v404 = vld [vmem:[%s3 + $0x38] sm:$0xf]
      %v405 = vld [vmem:[%s3 + $0x3c] sm:$0xf]
      %v406 = vld [vmem:[%s4] sm:$0x1]
      %v408 = vlaneseq
      %v409 = vshrl.u32 %v408, 7
      %v410 = vsub.s32 0, %v409
      %v411 = vrot.slane %v406, %v410
      %v429 = vunpack.c.l.b16 %v390
      %v430 = vunpack.c.l.b16 %v391
      %v431 = vunpack.c.l.b16 %v392
      %v432 = vunpack.c.l.b16 %v393
      %v433 = vunpack.c.l.b16 %v394
      %v434 = vunpack.c.l.b16 %v395
      %v435 = vunpack.c.l.b16 %v396
      %v436 = vunpack.c.l.b16 %v397
      %v437 = vunpack.c.l.b16 %v398
      %v438 = vunpack.c.l.b16 %v399
      %v439 = vunpack.c.l.b16 %v400
      %v440 = vunpack.c.l.b16 %v401
      %v441 = vunpack.c.l.b16 %v402
      %v442 = vunpack.c.l.b16 %v403
      %v443 = vunpack.c.l.b16 %v404
      %v444 = vunpack.c.l.b16 %v405
      %v445 = vpack.c.b16 %v430, %v429
      %v446 = vpack.c.b16 %v432, %v431
      %v447 = vpack.c.b16 %v434, %v433
      %v448 = vpack.c.b16 %v436, %v435
      %v449 = vpack.c.b16 %v438, %v437
      %v450 = vpack.c.b16 %v440, %v439
      %v451 = vpack.c.b16 %v442, %v441
      %v452 = vpack.c.b16 %v444, %v443
      %461 = vmatprep.subr.bf16.mxu0 0
      %462 = vmatpush1.bf16.msra.mxu0 %v452
      %463 = vmatprep.subr.bf16.mxu0 0
      %464 = vmatpush1.bf16.msra.mxu0 %v451
      %465 = vmatprep.subr.bf16.mxu0 0
      %466 = vmatpush1.bf16.msra.mxu0 %v450
      %467 = vmatprep.subr.bf16.mxu0 0
      %468 = vmatpush1.bf16.msra.mxu0 %v449
      %469 = vmatprep.subr.bf16.mxu0 0
      %470 = vmatpush1.bf16.msra.mxu0 %v448
      %471 = vmatprep.subr.bf16.mxu0 0
      %472 = vmatpush1.bf16.msra.mxu0 %v447
      %473 = vmatprep.subr.bf16.mxu0 0
      %474 = vmatpush1.bf16.msra.mxu0 %v446
      %475 = vmatprep.subr.bf16.mxu0 0
      %476 = vmatpush1.bf16.msra.mxu0 %v445
      %477 = vmatprep.subr.bf16.mxu0 0
      %478 = vmatpush2.bf16.msra.mxu0 0
      %479 = vmatprep.subr.bf16.mxu0 0
      %480 = vmatpush2.bf16.msra.mxu0 0
      %481 = vmatprep.subr.bf16.mxu0 0
      %482 = vmatpush2.bf16.msra.mxu0 0
      %483 = vmatprep.subr.bf16.mxu0 0
      %484 = vmatpush2.bf16.msra.mxu0 0
      %485 = vmatprep.subr.bf16.mxu0 0
      %486 = vmatpush2.bf16.msra.mxu0 0
      %487 = vmatprep.subr.bf16.mxu0 0
      %488 = vmatpush2.bf16.msra.mxu0 0
      %489 = vmatprep.subr.bf16.mxu0 0
      %490 = vmatpush2.bf16.msra.mxu0 0
      %491 = vmatprep.subr.bf16.mxu0 0
      %492 = vmatpush2.bf16.msra.mxu0 0
      %493 = vmatprep.mubr.bf16.mxu0 0
      %494 = vmatmul.mubr.bf16.gmra.mxu0 %v387
      %v495 = vpop.f32.mrf.mxu0
      %v496 = vadd.f32 %v411, %v495
      %v497 = vpop.f32.mrf.mxu0
      %v498 = vpop.f32.mrf.mxu0
      %v499 = vadd.f32 %v411, %v498
      %v500 = vpop.f32.mrf.mxu0
      %501 = vmatprep.mubr.bf16.mxu0 0
      %502 = vmatmul.mubr.bf16.gmra.mxu0 %v388
      %v503 = vpop.f32.mrf.mxu0
      %v504 = vadd.f32 %v411, %v503
      %v505 = vpop.f32.mrf.mxu0
      %v506 = vpop.f32.mrf.mxu0
      %v507 = vadd.f32 %v411, %v506
      %v508 = vpop.f32.mrf.mxu0
      %509 = vmatprep.mubr.bf16.mxu0 0
      %510 = vmatmul.mubr.bf16.gmra.mxu0 %v389
      %v511 = vpop.f32.mrf.mxu0
      %v512 = vadd.f32 %v411, %v511
      %v513 = vpop.f32.mrf.mxu0
      %v514 = vpop.f32.mrf.mxu0
      %v515 = vpop.f32.mrf.mxu0
      %516 = vdwg.mxu0
      %v517 = vmax.f32 %v496, 0.0
      %v518 = vmax.f32 %v499, 0.0
      %v519 = vmax.f32 %v504, 0.0
      %v520 = vmax.f32 %v507, 0.0
      %v521 = vmax.f32 %v512, 0.0
      %v522 = vpack.c.bf16 %v518, %v517
      %v523 = vpack.c.bf16 %v520, %v519
      %v524 = vpack.c.bf16 %v521, %v521
      %v525 = vld [vmem:[%s5] sm:$0xf]
      %v526 = vld [vmem:[%s5 + $0x4] sm:$0xf]
      %v527 = vld [vmem:[%s5 + $0x8] sm:$0xf]
      %v528 = vld [vmem:[%s5 + $0xc] sm:$0xf]
      %v529 = vld [vmem:[%s5 + $0x10] sm:$0xf]
      %v530 = vld [vmem:[%s5 + $0x14] sm:$0xf]
      %v531 = vld [vmem:[%s5 + $0x18] sm:$0xf]
      %v532 = vld [vmem:[%s5 + $0x1c] sm:$0xf]
      %v533 = vld [vmem:[%s5 + $0x20] sm:$0xf]
      %v534 = vld [vmem:[%s5 + $0x24] sm:$0xf]
      %v535 = vld [vmem:[%s5 + $0x28] sm:$0xf]
      %v536 = vld [vmem:[%s5 + $0x2c] sm:$0xf]
      %v537 = vld [vmem:[%s5 + $0x30] sm:$0xf]
      %v538 = vld [vmem:[%s5 + $0x34] sm:$0xf]
      %v539 = vld [vmem:[%s5 + $0x38] sm:$0xf]
      %v540 = vld [vmem:[%s5 + $0x3c] sm:$0xf]
      %v541 = vld [vmem:[%s6] sm:$0x1]
      %v543 = vlaneseq
      %v544 = vshrl.u32 %v543, 7
      %v545 = vsub.s32 0, %v544
      %v546 = vrot.slane %v541, %v545
      %v564 = vunpack.c.l.b16 %v525
      %v565 = vunpack.c.l.b16 %v526
      %v566 = vunpack.c.l.b16 %v527
      %v567 = vunpack.c.l.b16 %v528
      %v568 = vunpack.c.l.b16 %v529
      %v569 = vunpack.c.l.b16 %v530
      %v570 = vunpack.c.l.b16 %v531
      %v571 = vunpack.c.l.b16 %v532
      %v572 = vunpack.c.l.b16 %v533
      %v573 = vunpack.c.l.b16 %v534
      %v574 = vunpack.c.l.b16 %v535
      %v575 = vunpack.c.l.b16 %v536
      %v576 = vunpack.c.l.b16 %v537
      %v577 = vunpack.c.l.b16 %v538
      %v578 = vunpack.c.l.b16 %v539
      %v579 = vunpack.c.l.b16 %v540
      %v580 = vpack.c.b16 %v565, %v564
      %v581 = vpack.c.b16 %v567, %v566
      %v582 = vpack.c.b16 %v569, %v568
      %v583 = vpack.c.b16 %v571, %v570
      %v584 = vpack.c.b16 %v573, %v572
      %v585 = vpack.c.b16 %v575, %v574
      %v586 = vpack.c.b16 %v577, %v576
      %v587 = vpack.c.b16 %v579, %v578
      %596 = vmatprep.subr.bf16.mxu0 0
      %597 = vmatpush1.bf16.msra.mxu0 %v587
      %598 = vmatprep.subr.bf16.mxu0 0
      %599 = vmatpush1.bf16.msra.mxu0 %v586
      %600 = vmatprep.subr.bf16.mxu0 0
      %601 = vmatpush1.bf16.msra.mxu0 %v585
      %602 = vmatprep.subr.bf16.mxu0 0
      %603 = vmatpush1.bf16.msra.mxu0 %v584
      %604 = vmatprep.subr.bf16.mxu0 0
      %605 = vmatpush1.bf16.msra.mxu0 %v583
      %606 = vmatprep.subr.bf16.mxu0 0
      %607 = vmatpush1.bf16.msra.mxu0 %v582
      %608 = vmatprep.subr.bf16.mxu0 0
      %609 = vmatpush1.bf16.msra.mxu0 %v581
      %610 = vmatprep.subr.bf16.mxu0 0
      %611 = vmatpush1.bf16.msra.mxu0 %v580
      %612 = vmatprep.subr.bf16.mxu0 0
      %613 = vmatpush2.bf16.msra.mxu0 0
      %614 = vmatprep.subr.bf16.mxu0 0
      %615 = vmatpush2.bf16.msra.mxu0 0
      %616 = vmatprep.subr.bf16.mxu0 0
      %617 = vmatpush2.bf16.msra.mxu0 0
      %618 = vmatprep.subr.bf16.mxu0 0
      %619 = vmatpush2.bf16.msra.mxu0 0
      %620 = vmatprep.subr.bf16.mxu0 0
      %621 = vmatpush2.bf16.msra.mxu0 0
      %622 = vmatprep.subr.bf16.mxu0 0
      %623 = vmatpush2.bf16.msra.mxu0 0
      %624 = vmatprep.subr.bf16.mxu0 0
      %625 = vmatpush2.bf16.msra.mxu0 0
      %626 = vmatprep.subr.bf16.mxu0 0
      %627 = vmatpush2.bf16.msra.mxu0 0
      %628 = vmatprep.mubr.bf16.mxu0 0
      %629 = vmatmul.mubr.bf16.gmra.mxu0 %v522
      %v630 = vpop.f32.mrf.mxu0
      %v631 = vadd.f32 %v546, %v630
      %v632 = vpop.f32.mrf.mxu0
      %v633 = vpop.f32.mrf.mxu0
      %v634 = vadd.f32 %v546, %v633
      %v635 = vpop.f32.mrf.mxu0
      %636 = vmatprep.mubr.bf16.mxu0 0
      %637 = vmatmul.mubr.bf16.gmra.mxu0 %v523
      %v638 = vpop.f32.mrf.mxu0
      %v639 = vadd.f32 %v546, %v638
      %v640 = vpop.f32.mrf.mxu0
      %v641 = vpop.f32.mrf.mxu0
      %v642 = vadd.f32 %v546, %v641
      %v643 = vpop.f32.mrf.mxu0
      %644 = vmatprep.mubr.bf16.mxu0 0
      %645 = vmatmul.mubr.bf16.gmra.mxu0 %v524
      %v646 = vpop.f32.mrf.mxu0
      %v647 = vadd.f32 %v546, %v646
      %v648 = vpop.f32.mrf.mxu0
      %v649 = vpop.f32.mrf.mxu0
      %v650 = vpop.f32.mrf.mxu0
      %651 = vdwg.mxu0
      %v652 = vxor.u32 %v631, 2147483648
      %v653 = vxor.u32 %v634, 2147483648
      %v654 = vxor.u32 %v639, 2147483648
      %v655 = vxor.u32 %v642, 2147483648
      %v656 = vxor.u32 %v647, 2147483648
      %v657 = vmul.f32 %v652, 1.442695
      %v658 = vpow.pop %v657
      %v659 = vmul.f32 %v653, 1.442695
      %v660 = vpow.pop %v659
      %v661 = vmul.f32 %v654, 1.442695
      %v662 = vpow.pop %v661
      %v663 = vmul.f32 %v655, 1.442695
      %v664 = vpow.pop %v663
      %v665 = vmul.f32 %v656, 1.442695
      %v666 = vpow.pop %v665
      %v667 = vadd.f32 %v658, 1.0
      %v668 = vadd.f32 %v660, 1.0
      %v669 = vadd.f32 %v662, 1.0
      %v670 = vadd.f32 %v664, 1.0
      %v671 = vadd.f32 %v666, 1.0
      %v672 = vrcp.pop %v667
      %v673 = vmul.f32 1.0, %v672
      %v674 = vrcp.pop %v668
      %v675 = vmul.f32 1.0, %v674
      %v676 = vrcp.pop %v669
      %v677 = vmul.f32 1.0, %v676
      %v678 = vrcp.pop %v670
      %v679 = vmul.f32 1.0, %v678
      %v680 = vrcp.pop %v671
      %v681 = vmul.f32 1.0, %v680
      %vm682 = vcmask 64512
      %683 = vst.msk [vmem:[%s280] sm:$0xff] %vm682, %v673
      %684 = vst.msk [vmem:[%s280 + $0x8] sm:$0xff] %vm682, %v675
      %685 = vst.msk [vmem:[%s280 + $0x10] sm:$0xff] %vm682, %v677
      %686 = vst.msk [vmem:[%s280 + $0x18] sm:$0xff] %vm682, %v679
      %687 = vst.msk [vmem:[%s280 + $0x20] sm:$0xff] %vm682, %v681
      %s688 = smul.u32 5, %s18
      %p689 = scmp.lt.s32.totalorder %s688, 39
      %s690 = scalar_select %p689, %s688, 39
      %s691 = smul.addr %s690, 8
      %s692 = scalar_lea.vmem %s7, %s691
      // Predicated region
      $region49: #{tonys_mlp_forward.1} parent=47 // pred_check
        %p693 = pneg %p188
      $region50: #{tonys_mlp_forward.1} parent=47 // pred_check_branch
        %695 = sbr.rel (%p693) target = $region52
      $region51: #{tonys_mlp_forward.1} parent=47 // pred_region
        %s696 = smul.u32 5, %s18
      $region52: #{tonys_mlp_forward.1} parent=47 // pred_fallthru
        _
    $region48: #{tonys_mlp_forward.1} parent=5 // pred_fallthru
      _
    %p697 = scmp.le.s32.totalorder 2, %s13
    // Predicated region
    $region53: #{tonys_mlp_forward.1} parent=5 // pred_check
      %p698 = pneg %p697
    $region54: #{tonys_mlp_forward.1} parent=5 // pred_check_branch
      %700 = sbr.rel (%p698) target = $region56
    $region55: #{tonys_mlp_forward.1} parent=5 // pred_region
      %s701 = ssub.s32 %s13, 2
      // Predicated region
      $region57: #{tonys_mlp_forward.1} parent=55 // pred_check
        %p702 = pneg %p194
      $region58: #{tonys_mlp_forward.1} parent=55 // pred_check_branch
        %704 = sbr.rel (%p702) target = $region60
      $region59: #{tonys_mlp_forward.1} parent=55 // pred_region
        %s705 = smul.u32 5, %s19
        %p706 = scmp.lt.s32.totalorder %s705, 39
        %s707 = scalar_select %p706, %s705, 39
        %s708 = smul.addr %s707, 8
        %s709 = scalar_lea.vmem %s7, %s708
      $region60: #{tonys_mlp_forward.1} parent=55 // pred_fallthru
        _
    $region56: #{tonys_mlp_forward.1} parent=5 // pred_fallthru
      _
  $region6: #{tonys_mlp_forward.1} parent=0 // loop_footer
    %s17 = sadd.s32 1, %s13
  $region7: #{tonys_mlp_forward.1} parent=0 // loop_footer_branch
    %12 = sbr.rel target = $region3
  $region8: #{tonys_mlp_forward.1} parent=0 // loop_exit
    _

</llo_original>
